<compile_context>
chip_gen: v7x
topology: tpu7x:2x2x1
jax: 0.10.0
libtpu: 0.0.40
codegen_flags: <defaults>
</compile_context>

<pallas_src>
import jax
import jax.numpy as jnp
from jax.experimental import pallas as pl
from jax.experimental.pallas import tpu as pltpu


def _round_up(x, m):
    return ((x + m - 1) // m) * m


def _dda_kernel(dr_ref, dme_ref,
                w1dr_ref, b1dr_ref, w2dr_ref, b2dr_ref,
                w1dme_ref, b1dme_ref, w2dme_ref, b2dme_ref,
                out_dr_ref, out_dme_ref):
    dr = dr_ref[...]                                   # (TB, F) f32
    dme = dme_ref[...]                                 # (TB, F) f32

    # dr-attention branch (fed by dme).
    h_dr = jnp.maximum(
        jnp.dot(dme.astype(jnp.bfloat16), w1dr_ref[...],
                preferred_element_type=jnp.float32) + b1dr_ref[...], 0.0)
    a_dr = jax.nn.sigmoid(
        jnp.dot(h_dr.astype(jnp.bfloat16), w2dr_ref[...],
                preferred_element_type=jnp.float32) + b2dr_ref[...])

    # dme-attention branch (fed by dr).
    h_dme = jnp.maximum(
        jnp.dot(dr.astype(jnp.bfloat16), w1dme_ref[...],
                preferred_element_type=jnp.float32) + b1dme_ref[...], 0.0)
    a_dme = jax.nn.sigmoid(
        jnp.dot(h_dme.astype(jnp.bfloat16), w2dme_ref[...],
                preferred_element_type=jnp.float32) + b2dme_ref[...])

    out_dr_ref[...] = dr * a_dr
    out_dme_ref[...] = dme * a_dme


def disease_dependent_attention(dr, dme, params, *, tb=1024):
    """dr, dme: [B, F] float32. params: dict of pre-transposed weights/biases."""
    B, F = dr.shape
    H = params["w1_dr"].shape[1]

    # Cast weights to bf16 once (host side), keep biases f32.
    w1dr = params["w1_dr"].astype(jnp.bfloat16)    # (F, H)
    w2dr = params["w2_dr"].astype(jnp.bfloat16)    # (H, F)
    w1dme = params["w1_dme"].astype(jnp.bfloat16)  # (F, H)
    w2dme = params["w2_dme"].astype(jnp.bfloat16)  # (H, F)
    b1dr, b2dr = params["b1_dr"], params["b2_dr"]        # (1, H), (1, F)
    b1dme, b2dme = params["b1_dme"], params["b2_dme"]    # (1, H), (1, F)

    # Tile selection: big tiles to amortize per-step overhead, but keep >= 2
    # grid steps when the batch allows it (v7x megacore), sublane-aligned.
    TB = max(8, min(tb, _round_up(max(pl.cdiv(B, 2), 1), 8)))
    grid = (pl.cdiv(B, TB),)

    batch_spec = pl.BlockSpec((TB, F), lambda i: (i, 0))
    const = lambda shape: pl.BlockSpec(shape, lambda i: (0, 0))  # VMEM-resident params

    in_specs = [
        batch_spec,            # dr
        batch_spec,            # dme
        const((F, H)),         # w1_dr (bf16)
        const((1, H)),         # b1_dr
        const((H, F)),         # w2_dr (bf16)
        const((1, F)),         # b2_dr
        const((F, H)),         # w1_dme (bf16)
        const((1, H)),         # b1_dme
        const((H, F)),         # w2_dme (bf16)
        const((1, F)),         # b2_dme
    ]
    out_specs = (batch_spec, batch_spec)
    out_shape = (jax.ShapeDtypeStruct((B, F), jnp.float32),
                 jax.ShapeDtypeStruct((B, F), jnp.float32))

    # Rough VMEM budget: 4 I/O streams double-buffered + intermediates,
    # capped at 32 MiB (safe on all generations, above v5e's 16 MiB default).
    block_bytes = TB * F * 4
    vmem_limit = int(min(32 << 20, max(16 << 20, 12 * block_bytes)))

    cost = pl.CostEstimate(
        flops=8 * B * F * H,                       # four small matmuls
        transcendentals=2 * B * F,                 # sigmoids
        bytes_accessed=4 * B * F * 4 + 4 * F * H * 2 + 2 * (H + F) * 4,
    )

    out_dr, out_dme = pl.pallas_call(
        _dda_kernel,
        out_shape=out_shape,
        grid=grid,
        in_specs=in_specs,
        out_specs=out_specs,
        compiler_params=pltpu.CompilerParams(
            dimension_semantics=("parallel",),
            vmem_limit_bytes=vmem_limit),
        cost_estimate=cost,
    )(dr, dme, w1dr, b1dr, w2dr, b2dr, w1dme, b1dme, w2dme, b2dme)

    return out_dr, out_dme


def make_params(key, in_features, reduction_ratio=16):
    hidden = in_features // reduction_ratio
    ks = jax.random.split(key, 8)
    scale1 = 1.0 / jnp.sqrt(in_features)
    scale2 = 1.0 / jnp.sqrt(hidden)
    # Stored already transposed: Linear(in, out) weight [out, in] -> [in, out].
    return {
        "w1_dr":  jax.random.uniform(ks[0], (in_features, hidden), jnp.float32, -scale1, scale1),
        "b1_dr":  jax.random.uniform(ks[1], (1, hidden), jnp.float32, -scale1, scale1),
        "w2_dr":  jax.random.uniform(ks[2], (hidden, in_features), jnp.float32, -scale2, scale2),
        "b2_dr":  jax.random.uniform(ks[3], (1, in_features), jnp.float32, -scale2, scale2),
        "w1_dme": jax.random.uniform(ks[4], (in_features, hidden), jnp.float32, -scale1, scale1),
        "b1_dme": jax.random.uniform(ks[5], (1, hidden), jnp.float32, -scale1, scale1),
        "w2_dme": jax.random.uniform(ks[6], (hidden, in_features), jnp.float32, -scale2, scale2),
        "b2_dme": jax.random.uniform(ks[7], (1, in_features), jnp.float32, -scale2, scale2),
    }


def reference(dr, dme, p):
    def mlp(x, w1, b1, w2, b2):
        h = jnp.maximum(x @ w1 + b1, 0.0)
        return jax.nn.sigmoid(h @ w2 + b2)
    a_dr = mlp(dme, p["w1_dr"], p["b1_dr"], p["w2_dr"], p["b2_dr"])
    a_dme = mlp(dr, p["w1_dme"], p["b1_dme"], p["w2_dme"], p["b2_dme"])
    return dr * a_dr, dme * a_dme


if __name__ == "__main__":
    F, R = 128, 16   # in_features, reduction_ratio (hidden = 8)

    key = jax.random.PRNGKey(0)
    k_dr, k_dme, k_p = jax.random.split(key, 3)
    params = make_params(k_p, F, R)

    # bf16 MXU operands -> tolerance relaxed vs. the f32 reference.
    ATOL = RTOL = 2e-2

    # Case 1: tiny batch (single grid step).
    B = 8
    dr_features = jax.random.normal(k_dr, (B, F), jnp.float32)
    dme_features = jax.random.normal(k_dme, (B, F), jnp.float32)
    out_dr, out_dme = disease_dependent_attention(dr_features, dme_features, params)
    jax.block_until_ready((out_dr, out_dme))
    ref_dr, ref_dme = reference(dr_features, dme_features, params)
    assert out_dr.shape == (B, F) and out_dme.shape == (B, F)
    assert jnp.allclose(out_dr, ref_dr, atol=ATOL, rtol=RTOL)
    assert jnp.allclose(out_dme, ref_dme, atol=ATOL, rtol=RTOL)

    # Case 2: batch not a multiple of the tile -> exercises the ragged
    # last-block path (no host-side pad/slice anymore).
    B2 = 300
    dr2 = jax.random.normal(jax.random.PRNGKey(1), (B2, F), jnp.float32)
    dme2 = jax.random.normal(jax.random.PRNGKey(2), (B2, F), jnp.float32)
    out_dr2, out_dme2 = disease_dependent_attention(dr2, dme2, params)
    jax.block_until_ready((out_dr2, out_dme2))
    ref_dr2, ref_dme2 = reference(dr2, dme2, params)
    assert out_dr2.shape == (B2, F) and out_dme2.shape == (B2, F)
    assert jnp.allclose(out_dr2, ref_dr2, atol=ATOL, rtol=RTOL)
    assert jnp.allclose(out_dme2, ref_dme2, atol=ATOL, rtol=RTOL)

    print("KERNEL_OK")
</pallas_src>

<mosaic_0001>
module attributes {stable_mosaic.version = 11 : i64} {
  func.func @_dda_kernel(%arg0: i32, %arg1: memref<8x128xf32, #tpu.memory_space<vmem>>, %arg2: memref<8x128xf32, #tpu.memory_space<vmem>>, %arg3: memref<128x8xbf16, #tpu.memory_space<vmem>>, %arg4: memref<1x8xf32, #tpu.memory_space<vmem>>, %arg5: memref<8x128xbf16, #tpu.memory_space<vmem>>, %arg6: memref<1x128xf32, #tpu.memory_space<vmem>>, %arg7: memref<128x8xbf16, #tpu.memory_space<vmem>>, %arg8: memref<1x8xf32, #tpu.memory_space<vmem>>, %arg9: memref<8x128xbf16, #tpu.memory_space<vmem>>, %arg10: memref<1x128xf32, #tpu.memory_space<vmem>>, %arg11: memref<8x128xf32, #tpu.memory_space<vmem>>, %arg12: memref<8x128xf32, #tpu.memory_space<vmem>>) attributes {dimension_semantics = [#tpu.dimension_semantics<parallel>], iteration_bounds = array<i64: 1>, scalar_prefetch = 0 : i64, scratch_operands = 0 : i64, tpu.core_type = #tpu.core_type<tc>, window_params = [{transform_indices = @transform_0, window_bounds = array<i64: 8, 128>}, {transform_indices = @transform_1, window_bounds = array<i64: 8, 128>}, {pipeline_mode = #tpu.pipeline_mode<synchronous>, transform_indices = @transform_2, window_bounds = array<i64: 128, 8>}, {pipeline_mode = #tpu.pipeline_mode<synchronous>, transform_indices = @transform_3, window_bounds = array<i64: 1, 8>}, {pipeline_mode = #tpu.pipeline_mode<synchronous>, transform_indices = @transform_4, window_bounds = array<i64: 8, 128>}, {pipeline_mode = #tpu.pipeline_mode<synchronous>, transform_indices = @transform_5, window_bounds = array<i64: 1, 128>}, {pipeline_mode = #tpu.pipeline_mode<synchronous>, transform_indices = @transform_6, window_bounds = array<i64: 128, 8>}, {pipeline_mode = #tpu.pipeline_mode<synchronous>, transform_indices = @transform_7, window_bounds = array<i64: 1, 8>}, {pipeline_mode = #tpu.pipeline_mode<synchronous>, transform_indices = @transform_8, window_bounds = array<i64: 8, 128>}, {pipeline_mode = #tpu.pipeline_mode<synchronous>, transform_indices = @transform_9, window_bounds = array<i64: 1, 128>}, {transform_indices = @transform_10, window_bounds = array<i64: 8, 128>}, {transform_indices = @transform_11, window_bounds = array<i64: 8, 128>}]} {
    %c0 = arith.constant 0 : index
    %c0_0 = arith.constant 0 : index
    %0 = vector.load %arg1[%c0, %c0_0] : memref<8x128xf32, #tpu.memory_space<vmem>>, vector<8x128xf32>
    %c0_1 = arith.constant 0 : index
    %c0_2 = arith.constant 0 : index
    %1 = vector.load %arg2[%c0_1, %c0_2] : memref<8x128xf32, #tpu.memory_space<vmem>>, vector<8x128xf32>
    %2 = arith.truncf %1 : vector<8x128xf32> to vector<8x128xbf16>
    %c0_3 = arith.constant 0 : index
    %c0_4 = arith.constant 0 : index
    %3 = vector.load %arg3[%c0_3, %c0_4] : memref<128x8xbf16, #tpu.memory_space<vmem>>, vector<128x8xbf16>
    %cst = arith.constant dense<0.000000e+00> : vector<8x8xf32>
    %4 = tpu.matmul %2, %3, %cst {dimension_numbers = #tpu.dot_dimension_numbers<[1], [0], [0], [1], [0, 0, 1, 1], [], []>} : vector<8x128xbf16>, vector<128x8xbf16>, vector<8x8xf32> -> vector<8x8xf32>
    %c0_5 = arith.constant 0 : index
    %c0_6 = arith.constant 0 : index
    %5 = vector.load %arg4[%c0_5, %c0_6] : memref<1x8xf32, #tpu.memory_space<vmem>>, vector<1x8xf32>
    %6 = vector.broadcast %5 : vector<1x8xf32> to vector<8x8xf32>
    %7 = arith.addf %4, %6 : vector<8x8xf32>
    %cst_7 = arith.constant 0.000000e+00 : f32
    %8 = vector.broadcast %cst_7 : f32 to vector<8x8xf32>
    %9 = arith.maximumf %7, %8 : vector<8x8xf32>
    %10 = arith.truncf %9 : vector<8x8xf32> to vector<8x8xbf16>
    %c0_8 = arith.constant 0 : index
    %c0_9 = arith.constant 0 : index
    %11 = vector.load %arg5[%c0_8, %c0_9] : memref<8x128xbf16, #tpu.memory_space<vmem>>, vector<8x128xbf16>
    %cst_10 = arith.constant dense<0.000000e+00> : vector<8x128xf32>
    %12 = tpu.matmul %10, %11, %cst_10 {dimension_numbers = #tpu.dot_dimension_numbers<[1], [0], [0], [1], [0, 0, 1, 1], [], []>} : vector<8x8xbf16>, vector<8x128xbf16>, vector<8x128xf32> -> vector<8x128xf32>
    %c0_11 = arith.constant 0 : index
    %c0_12 = arith.constant 0 : index
    %13 = vector.load %arg6[%c0_11, %c0_12] : memref<1x128xf32, #tpu.memory_space<vmem>>, vector<1x128xf32>
    %14 = vector.broadcast %13 : vector<1x128xf32> to vector<8x128xf32>
    %15 = arith.addf %12, %14 : vector<8x128xf32>
    %16 = arith.negf %15 : vector<8x128xf32>
    %17 = math.exp %16 : vector<8x128xf32>
    %cst_13 = arith.constant 1.000000e+00 : f32
    %18 = vector.broadcast %cst_13 : f32 to vector<8x128xf32>
    %19 = arith.addf %18, %17 : vector<8x128xf32>
    %20 = arith.divf %18, %19 : vector<8x128xf32>
    %21 = arith.truncf %0 : vector<8x128xf32> to vector<8x128xbf16>
    %c0_14 = arith.constant 0 : index
    %c0_15 = arith.constant 0 : index
    %22 = vector.load %arg7[%c0_14, %c0_15] : memref<128x8xbf16, #tpu.memory_space<vmem>>, vector<128x8xbf16>
    %cst_16 = arith.constant dense<0.000000e+00> : vector<8x8xf32>
    %23 = tpu.matmul %21, %22, %cst_16 {dimension_numbers = #tpu.dot_dimension_numbers<[1], [0], [0], [1], [0, 0, 1, 1], [], []>} : vector<8x128xbf16>, vector<128x8xbf16>, vector<8x8xf32> -> vector<8x8xf32>
    %c0_17 = arith.constant 0 : index
    %c0_18 = arith.constant 0 : index
    %24 = vector.load %arg8[%c0_17, %c0_18] : memref<1x8xf32, #tpu.memory_space<vmem>>, vector<1x8xf32>
    %25 = vector.broadcast %24 : vector<1x8xf32> to vector<8x8xf32>
    %26 = arith.addf %23, %25 : vector<8x8xf32>
    %cst_19 = arith.constant 0.000000e+00 : f32
    %27 = vector.broadcast %cst_19 : f32 to vector<8x8xf32>
    %28 = arith.maximumf %26, %27 : vector<8x8xf32>
    %29 = arith.truncf %28 : vector<8x8xf32> to vector<8x8xbf16>
    %c0_20 = arith.constant 0 : index
    %c0_21 = arith.constant 0 : index
    %30 = vector.load %arg9[%c0_20, %c0_21] : memref<8x128xbf16, #tpu.memory_space<vmem>>, vector<8x128xbf16>
    %cst_22 = arith.constant dense<0.000000e+00> : vector<8x128xf32>
    %31 = tpu.matmul %29, %30, %cst_22 {dimension_numbers = #tpu.dot_dimension_numbers<[1], [0], [0], [1], [0, 0, 1, 1], [], []>} : vector<8x8xbf16>, vector<8x128xbf16>, vector<8x128xf32> -> vector<8x128xf32>
    %c0_23 = arith.constant 0 : index
    %c0_24 = arith.constant 0 : index
    %32 = vector.load %arg10[%c0_23, %c0_24] : memref<1x128xf32, #tpu.memory_space<vmem>>, vector<1x128xf32>
    %33 = vector.broadcast %32 : vector<1x128xf32> to vector<8x128xf32>
    %34 = arith.addf %31, %33 : vector<8x128xf32>
    %35 = arith.negf %34 : vector<8x128xf32>
    %36 = math.exp %35 : vector<8x128xf32>
    %cst_25 = arith.constant 1.000000e+00 : f32
    %37 = vector.broadcast %cst_25 : f32 to vector<8x128xf32>
    %38 = arith.addf %37, %36 : vector<8x128xf32>
    %39 = arith.divf %37, %38 : vector<8x128xf32>
    %40 = arith.mulf %0, %20 : vector<8x128xf32>
    %c0_26 = arith.constant 0 : index
    %c0_27 = arith.constant 0 : index
    %41 = vector.load %arg11[%c0_26, %c0_27] : memref<8x128xf32, #tpu.memory_space<vmem>>, vector<8x128xf32>
    tpu.vector_store %arg11[%c0_26, %c0_27], %40 {strides = array<i32>} : memref<8x128xf32, #tpu.memory_space<vmem>>, vector<8x128xf32>,
    %42 = arith.mulf %1, %39 : vector<8x128xf32>
    %c0_28 = arith.constant 0 : index
    %c0_29 = arith.constant 0 : index
    %43 = vector.load %arg12[%c0_28, %c0_29] : memref<8x128xf32, #tpu.memory_space<vmem>>, vector<8x128xf32>
    tpu.vector_store %arg12[%c0_28, %c0_29], %42 {strides = array<i32>} : memref<8x128xf32, #tpu.memory_space<vmem>>, vector<8x128xf32>,
    return
  }
  func.func @transform_0(%arg0: i32) -> (i32, i32) {
    %c0_i32 = arith.constant 0 : i32
    %c0_i32_0 = arith.constant 0 : i32
    return %arg0, %c0_i32 : i32, i32
  }
  func.func @transform_1(%arg0: i32) -> (i32, i32) {
    %c0_i32 = arith.constant 0 : i32
    %c0_i32_0 = arith.constant 0 : i32
    return %arg0, %c0_i32 : i32, i32
  }
  func.func @transform_2(%arg0: i32) -> (i32, i32) {
    %c0_i32 = arith.constant 0 : i32
    %c0_i32_0 = arith.constant 0 : i32
    %c0_i32_1 = arith.constant 0 : i32
    return %c0_i32, %c0_i32_0 : i32, i32
  }
  func.func @transform_3(%arg0: i32) -> (i32, i32) {
    %c0_i32 = arith.constant 0 : i32
    %c0_i32_0 = arith.constant 0 : i32
    %c0_i32_1 = arith.constant 0 : i32
    return %c0_i32, %c0_i32_0 : i32, i32
  }
  func.func @transform_4(%arg0: i32) -> (i32, i32) {
    %c0_i32 = arith.constant 0 : i32
    %c0_i32_0 = arith.constant 0 : i32
    %c0_i32_1 = arith.constant 0 : i32
    return %c0_i32, %c0_i32_0 : i32, i32
  }
  func.func @transform_5(%arg0: i32) -> (i32, i32) {
    %c0_i32 = arith.constant 0 : i32
    %c0_i32_0 = arith.constant 0 : i32
    %c0_i32_1 = arith.constant 0 : i32
    return %c0_i32, %c0_i32_0 : i32, i32
  }
  func.func @transform_6(%arg0: i32) -> (i32, i32) {
    %c0_i32 = arith.constant 0 : i32
    %c0_i32_0 = arith.constant 0 : i32
    %c0_i32_1 = arith.constant 0 : i32
    return %c0_i32, %c0_i32_0 : i32, i32
  }
  func.func @transform_7(%arg0: i32) -> (i32, i32) {
    %c0_i32 = arith.constant 0 : i32
    %c0_i32_0 = arith.constant 0 : i32
    %c0_i32_1 = arith.constant 0 : i32
    return %c0_i32, %c0_i32_0 : i32, i32
  }
  func.func @transform_8(%arg0: i32) -> (i32, i32) {
    %c0_i32 = arith.constant 0 : i32
    %c0_i32_0 = arith.constant 0 : i32
    %c0_i32_1 = arith.constant 0 : i32
    return %c0_i32, %c0_i32_0 : i32, i32
  }
  func.func @transform_9(%arg0: i32) -> (i32, i32) {
    %c0_i32 = arith.constant 0 : i32
    %c0_i32_0 = arith.constant 0 : i32
    %c0_i32_1 = arith.constant 0 : i32
    return %c0_i32, %c0_i32_0 : i32, i32
  }
  func.func @transform_10(%arg0: i32) -> (i32, i32) {
    %c0_i32 = arith.constant 0 : i32
    %c0_i32_0 = arith.constant 0 : i32
    return %arg0, %c0_i32 : i32, i32
  }
  func.func @transform_11(%arg0: i32) -> (i32, i32) {
    %c0_i32 = arith.constant 0 : i32
    %c0_i32_0 = arith.constant 0 : i32
    return %arg0, %c0_i32 : i32, i32
  }
}

</mosaic_0001>

<llo_original>
// kernel: tpu_custom_call.1
$region0: #{tpu_custom_call.1}
  #allocation0 [shape = 'u32[]', space=smem, size = 0x4, offset = 0x4, fixed_abs, tag = 'smem constant byte address 0x4 - core index']
  #allocation1 [shape = 'u32[144,128]{1,0:T(1,128)}', space=vmem, size = 0x12000, scoped, tag = 'internal scratch']
  %s0 = inlined_call_operand.vmem [shape: f32[8,128], index: 0, kind: input, shape index: {}]
  %s1 = inlined_call_operand.vmem [shape: f32[8,128], index: 1, kind: input, shape index: {}]
  %s2 = inlined_call_operand.vmem [shape: bf16[128,8], index: 2, kind: input, shape index: {}]
  %s3 = inlined_call_operand.vmem [shape: f32[1,8], index: 3, kind: input, shape index: {}]
  %s4 = inlined_call_operand.vmem [shape: bf16[8,128], index: 4, kind: input, shape index: {}]
  %s5 = inlined_call_operand.vmem [shape: f32[1,128], index: 5, kind: input, shape index: {}]
  %s6 = inlined_call_operand.vmem [shape: bf16[128,8], index: 6, kind: input, shape index: {}]
  %s7 = inlined_call_operand.vmem [shape: f32[1,8], index: 7, kind: input, shape index: {}]
  %s8 = inlined_call_operand.vmem [shape: bf16[8,128], index: 8, kind: input, shape index: {}]
  %s9 = inlined_call_operand.vmem [shape: f32[1,128], index: 9, kind: input, shape index: {}]
  %s10 = inlined_call_operand.hbm [shape: f32[8,128], index: 10, kind: output, shape index: {0}]
  %s11 = inlined_call_operand.hbm [shape: f32[8,128], index: 11, kind: output, shape index: {1}]
  %12 = xla_tuple %s10, %s11
  %s13 = sld [smem:[#allocation0]]
  $region58: #{tpu_custom_call.1} parent=0
    _
  %s15 = ssub.s32 1, %s13
  %s16 = scalar_select 0, %s15, %s13
  $region1: #{tpu_custom_call.1} parent=0
    #allocation2 [shape = 'u8[4096]{0}', space=vmem, size = 0x1000, scoped, tag = 'output window, operand 0, single buffered']
    #allocation3 [shape = 's32[1]{0}', space=sflag, size = 0x4, scoped, tag = 'scoped memory for tpu_custom_call.1']
    #allocation4 [shape = 'u8[4096]{0}', space=vmem, size = 0x1000, scoped, tag = 'output window, operand 1, single buffered']
    #allocation5 [shape = 's32[1]{0}', space=sflag, size = 0x4, scoped, tag = 'scoped memory for tpu_custom_call.1']
    %17 = vsyncpa [#allocation3], 0
    %18 = vsyncpa [#allocation5], 0
    // Predicated region
    $region2: #{tpu_custom_call.1} parent=1 // pred_check
      _
    $region3: #{tpu_custom_call.1} parent=1 // pred_check_branch
      %20 = sbr.rel (0) target = $region5
    $region4: #{tpu_custom_call.1} parent=1 // pred_region
      _
    $region5: #{tpu_custom_call.1} parent=1 // pred_fallthru
      _
    // Predicated region
    $region6: #{tpu_custom_call.1} parent=1 // pred_check
      _
    $region7: #{tpu_custom_call.1} parent=1 // pred_check_branch
      %22 = sbr.rel (0) target = $region9
    $region8: #{tpu_custom_call.1} parent=1 // pred_region
      _
    $region9: #{tpu_custom_call.1} parent=1 // pred_fallthru
      _
    // Predicated region
    $region10: #{tpu_custom_call.1} parent=1 // pred_check
      _
    $region11: #{tpu_custom_call.1} parent=1 // pred_check_branch
      %24 = sbr.rel (0) target = $region13
    $region12: #{tpu_custom_call.1} parent=1 // pred_region
      _
    $region13: #{tpu_custom_call.1} parent=1 // pred_fallthru
      _
    // Predicated region
    $region14: #{tpu_custom_call.1} parent=1 // pred_check
      _
    $region15: #{tpu_custom_call.1} parent=1 // pred_check_branch
      %26 = sbr.rel (0) target = $region17
    $region16: #{tpu_custom_call.1} parent=1 // pred_region
      _
    $region17: #{tpu_custom_call.1} parent=1 // pred_fallthru
      _
    // Predicated region
    $region18: #{tpu_custom_call.1} parent=1 // pred_check
      _
    $region19: #{tpu_custom_call.1} parent=1 // pred_check_branch
      %28 = sbr.rel (0) target = $region21
    $region20: #{tpu_custom_call.1} parent=1 // pred_region
      _
    $region21: #{tpu_custom_call.1} parent=1 // pred_fallthru
      _
    // Predicated region
    $region22: #{tpu_custom_call.1} parent=1 // pred_check
      _
    $region23: #{tpu_custom_call.1} parent=1 // pred_check_branch
      %30 = sbr.rel (0) target = $region25
    $region24: #{tpu_custom_call.1} parent=1 // pred_region
      _
    $region25: #{tpu_custom_call.1} parent=1 // pred_fallthru
      _
    // Predicated region
    $region26: #{tpu_custom_call.1} parent=1 // pred_check
      _
    $region27: #{tpu_custom_call.1} parent=1 // pred_check_branch
      %32 = sbr.rel (0) target = $region29
    $region28: #{tpu_custom_call.1} parent=1 // pred_region
      _
    $region29: #{tpu_custom_call.1} parent=1 // pred_fallthru
      _
    // Predicated region
    $region30: #{tpu_custom_call.1} parent=1 // pred_check
      _
    $region31: #{tpu_custom_call.1} parent=1 // pred_check_branch
      %34 = sbr.rel (0) target = $region33
    $region32: #{tpu_custom_call.1} parent=1 // pred_region
      _
    $region33: #{tpu_custom_call.1} parent=1 // pred_fallthru
      _
    // Predicated region
    $region34: #{tpu_custom_call.1} parent=1 // pred_check
      _
    $region35: #{tpu_custom_call.1} parent=1 // pred_check_branch
      %36 = sbr.rel (0) target = $region37
    $region36: #{tpu_custom_call.1} parent=1 // pred_region
      _
    $region37: #{tpu_custom_call.1} parent=1 // pred_fallthru
      _
    // Predicated region
    $region38: #{tpu_custom_call.1} parent=1 // pred_check
      _
    $region39: #{tpu_custom_call.1} parent=1 // pred_check_branch
      %38 = sbr.rel (0) target = $region41
    $region40: #{tpu_custom_call.1} parent=1 // pred_region
      _
    $region41: #{tpu_custom_call.1} parent=1 // pred_fallthru
      _
    %v40 = vld [vmem:[%s0] sm:$0xff]
    %v41 = vld [vmem:[%s1] sm:$0xff]
    %v42 = vpack.c.bf16 %v41, %v41
    %v43 = vld [vmem:[%s2] sm:$0xf]
    %v44 = vld [vmem:[%s2 + $0x4] sm:$0xf]
    %v45 = vld [vmem:[%s2 + $0x8] sm:$0xf]
    %v46 = vld [vmem:[%s2 + $0xc] sm:$0xf]
    %v47 = vld [vmem:[%s2 + $0x10] sm:$0xf]
    %v48 = vld [vmem:[%s2 + $0x14] sm:$0xf]
    %v49 = vld [vmem:[%s2 + $0x18] sm:$0xf]
    %v50 = vld [vmem:[%s2 + $0x1c] sm:$0xf]
    %v51 = vld [vmem:[%s2 + $0x20] sm:$0xf]
    %v52 = vld [vmem:[%s2 + $0x24] sm:$0xf]
    %v53 = vld [vmem:[%s2 + $0x28] sm:$0xf]
    %v54 = vld [vmem:[%s2 + $0x2c] sm:$0xf]
    %v55 = vld [vmem:[%s2 + $0x30] sm:$0xf]
    %v56 = vld [vmem:[%s2 + $0x34] sm:$0xf]
    %v57 = vld [vmem:[%s2 + $0x38] sm:$0xf]
    %v58 = vld [vmem:[%s2 + $0x3c] sm:$0xf]
    %v59 = vld [vmem:[%s3] sm:$0x1]
    %v61 = vlaneseq
    %v62 = vshrl.u32 %v61, 7
    %v63 = vsub.s32 0, %v62
    %v64 = vrot.slane %v59, %v63
    %v82 = vunpack.c.l.b16 %v43
    %v83 = vunpack.c.l.b16 %v44
    %v84 = vunpack.c.l.b16 %v45
    %v85 = vunpack.c.l.b16 %v46
    %v86 = vunpack.c.l.b16 %v47
    %v87 = vunpack.c.l.b16 %v48
    %v88 = vunpack.c.l.b16 %v49
    %v89 = vunpack.c.l.b16 %v50
    %v90 = vunpack.c.l.b16 %v51
    %v91 = vunpack.c.l.b16 %v52
    %v92 = vunpack.c.l.b16 %v53
    %v93 = vunpack.c.l.b16 %v54
    %v94 = vunpack.c.l.b16 %v55
    %v95 = vunpack.c.l.b16 %v56
    %v96 = vunpack.c.l.b16 %v57
    %v97 = vunpack.c.l.b16 %v58
    %v98 = vpack.c.b16 %v83, %v82
    %v99 = vpack.c.b16 %v85, %v84
    %v100 = vpack.c.b16 %v87, %v86
    %v101 = vpack.c.b16 %v89, %v88
    %v102 = vpack.c.b16 %v91, %v90
    %v103 = vpack.c.b16 %v93, %v92
    %v104 = vpack.c.b16 %v95, %v94
    %v105 = vpack.c.b16 %v97, %v96
    %114 = vmatprep.subr.bf16.mxu0 0
    %115 = vmatpush1.bf16.msra.mxu0 %v98
    %116 = vmatprep.subr.bf16.mxu0 0
    %117 = vmatpush1.bf16.msra.mxu0 %v99
    %118 = vmatprep.subr.bf16.mxu0 0
    %119 = vmatpush1.bf16.msra.mxu0 %v100
    %120 = vmatprep.subr.bf16.mxu0 0
    %121 = vmatpush1.bf16.msra.mxu0 %v101
    %122 = vmatprep.subr.bf16.mxu0 0
    %123 = vmatpush1.bf16.msra.mxu0 %v102
    %124 = vmatprep.subr.bf16.mxu0 0
    %125 = vmatpush1.bf16.msra.mxu0 %v103
    %126 = vmatprep.subr.bf16.mxu0 0
    %127 = vmatpush1.bf16.msra.mxu0 %v104
    %128 = vmatprep.subr.bf16.mxu0 0
    %129 = vmatpush1.bf16.msra.mxu0 %v105
    %130 = vmatprep.subr.bf16.mxu0 0
    %131 = vmatpush1.bf16.msra.mxu0 0
    %132 = vmatprep.subr.bf16.mxu0 0
    %133 = vmatpush1.bf16.msra.mxu0 0
    %134 = vmatprep.subr.bf16.mxu0 0
    %135 = vmatpush1.bf16.msra.mxu0 0
    %136 = vmatprep.subr.bf16.mxu0 0
    %137 = vmatpush1.bf16.msra.mxu0 0
    %138 = vmatprep.subr.bf16.mxu0 0
    %139 = vmatpush1.bf16.msra.mxu0 0
    %140 = vmatprep.subr.bf16.mxu0 0
    %141 = vmatpush1.bf16.msra.mxu0 0
    %142 = vmatprep.subr.bf16.mxu0 0
    %143 = vmatpush1.bf16.msra.mxu0 0
    %144 = vmatprep.subr.bf16.mxu0 0
    %145 = vmatpush1.bf16.msra.mxu0 0
    %146 = vmatprep.mubr.bf16.mxu0 0
    %147 = vmatmul.mubr.bf16.gmra.mrb[0].mxu0 %v42
    %v148 = vpop.f32.mrb[0].mxu0
    %v149 = vadd.f32 %v64, %v148
    %v150 = vpop.f32.mrb[0].mxu0
    %v151 = vpop.f32.mrb[0].mxu0
    %v152 = vpop.f32.mrb[0].mxu0
    %153 = vdwg.mxu0
    %v154 = vmax.f32 %v149, 0.0
    %v155 = vpack.c.bf16 %v154, %v154
    %v156 = vld [vmem:[%s4] sm:$0xf]
    %v157 = vld [vmem:[%s5] sm:$0x1]
    %v159 = vlaneseq
    %v160 = vshrl.u32 %v159, 7
    %v161 = vsub.s32 0, %v160
    %v162 = vrot.slane %v157, %v161
    %vm164 = vcmask 64512
    %v166 = vsel %vm164, %v155, 0
    %vm168 = vcmask 1043456
    %v170 = vsel %vm168, %v156, 0
    %172 = vmatprep.subr.bf16.mxu0 0
    %173 = vmatpush1.bf16.msra.mxu0 %v170
    %174 = vmatprep.subr.bf16.mxu0 0
    %175 = vmatpush1.bf16.msra.mxu0 0
    %176 = vmatprep.subr.bf16.mxu0 0
    %177 = vmatpush1.bf16.msra.mxu0 0
    %178 = vmatprep.subr.bf16.mxu0 0
    %179 = vmatpush1.bf16.msra.mxu0 0
    %180 = vmatprep.subr.bf16.mxu0 0
    %181 = vmatpush1.bf16.msra.mxu0 0
    %182 = vmatprep.subr.bf16.mxu0 0
    %183 = vmatpush1.bf16.msra.mxu0 0
    %184 = vmatprep.subr.bf16.mxu0 0
    %185 = vmatpush1.bf16.msra.mxu0 0
    %186 = vmatprep.subr.bf16.mxu0 0
    %187 = vmatpush1.bf16.msra.mxu0 0
    %188 = vmatprep.subr.bf16.mxu0 0
    %189 = vmatpush1.bf16.msra.mxu0 0
    %190 = vmatprep.subr.bf16.mxu0 0
    %191 = vmatpush1.bf16.msra.mxu0 0
    %192 = vmatprep.subr.bf16.mxu0 0
    %193 = vmatpush1.bf16.msra.mxu0 0
    %194 = vmatprep.subr.bf16.mxu0 0
    %195 = vmatpush1.bf16.msra.mxu0 0
    %196 = vmatprep.subr.bf16.mxu0 0
    %197 = vmatpush1.bf16.msra.mxu0 0
    %198 = vmatprep.subr.bf16.mxu0 0
    %199 = vmatpush1.bf16.msra.mxu0 0
    %200 = vmatprep.subr.bf16.mxu0 0
    %201 = vmatpush1.bf16.msra.mxu0 0
    %202 = vmatprep.subr.bf16.mxu0 0
    %203 = vmatpush1.bf16.msra.mxu0 0
    %204 = vmatprep.mubr.bf16.mxu0 0
    %205 = vmatmul.mubr.bf16.gmra.mrb[0].mxu0 %v166
    %v206 = vpop.f32.mrb[0].mxu0
    %v207 = vadd.f32 %v162, %v206
    %v208 = vpop.f32.mrb[0].mxu0
    %v209 = vpop.f32.mrb[0].mxu0
    %v210 = vpop.f32.mrb[0].mxu0
    %211 = vdwg.mxu0
    %v212 = vxor.u32 %v207, 2147483648
    %v213 = vmul.f32 %v212, 1.442695
    %v214 = vpow.pop %v213
    %v215 = vadd.f32 %v214, 1.0
    %v216 = vrcp.pop %v215
    %v217 = vmul.f32 1.0, %v216
    %v218 = vpack.c.bf16 %v40, %v40
    %v219 = vld [vmem:[%s6] sm:$0xf]
    %v220 = vld [vmem:[%s6 + $0x4] sm:$0xf]
    %v221 = vld [vmem:[%s6 + $0x8] sm:$0xf]
    %v222 = vld [vmem:[%s6 + $0xc] sm:$0xf]
    %v223 = vld [vmem:[%s6 + $0x10] sm:$0xf]
    %v224 = vld [vmem:[%s6 + $0x14] sm:$0xf]
    %v225 = vld [vmem:[%s6 + $0x18] sm:$0xf]
    %v226 = vld [vmem:[%s6 + $0x1c] sm:$0xf]
    %v227 = vld [vmem:[%s6 + $0x20] sm:$0xf]
    %v228 = vld [vmem:[%s6 + $0x24] sm:$0xf]
    %v229 = vld [vmem:[%s6 + $0x28] sm:$0xf]
    %v230 = vld [vmem:[%s6 + $0x2c] sm:$0xf]
    %v231 = vld [vmem:[%s6 + $0x30] sm:$0xf]
    %v232 = vld [vmem:[%s6 + $0x34] sm:$0xf]
    %v233 = vld [vmem:[%s6 + $0x38] sm:$0xf]
    %v234 = vld [vmem:[%s6 + $0x3c] sm:$0xf]
    %v235 = vld [vmem:[%s7] sm:$0x1]
    %v237 = vlaneseq
    %v238 = vshrl.u32 %v237, 7
    %v239 = vsub.s32 0, %v238
    %v240 = vrot.slane %v235, %v239
    %v258 = vunpack.c.l.b16 %v219
    %v259 = vunpack.c.l.b16 %v220
    %v260 = vunpack.c.l.b16 %v221
    %v261 = vunpack.c.l.b16 %v222
    %v262 = vunpack.c.l.b16 %v223
    %v263 = vunpack.c.l.b16 %v224
    %v264 = vunpack.c.l.b16 %v225
    %v265 = vunpack.c.l.b16 %v226
    %v266 = vunpack.c.l.b16 %v227
    %v267 = vunpack.c.l.b16 %v228
    %v268 = vunpack.c.l.b16 %v229
    %v269 = vunpack.c.l.b16 %v230
    %v270 = vunpack.c.l.b16 %v231
    %v271 = vunpack.c.l.b16 %v232
    %v272 = vunpack.c.l.b16 %v233
    %v273 = vunpack.c.l.b16 %v234
    %v274 = vpack.c.b16 %v259, %v258
    %v275 = vpack.c.b16 %v261, %v260
    %v276 = vpack.c.b16 %v263, %v262
    %v277 = vpack.c.b16 %v265, %v264
    %v278 = vpack.c.b16 %v267, %v266
    %v279 = vpack.c.b16 %v269, %v268
    %v280 = vpack.c.b16 %v271, %v270
    %v281 = vpack.c.b16 %v273, %v272
    %290 = vmatprep.subr.bf16.mxu0 0
    %291 = vmatpush1.bf16.msra.mxu0 %v274
    %292 = vmatprep.subr.bf16.mxu0 0
    %293 = vmatpush1.bf16.msra.mxu0 %v275
    %294 = vmatprep.subr.bf16.mxu0 0
    %295 = vmatpush1.bf16.msra.mxu0 %v276
    %296 = vmatprep.subr.bf16.mxu0 0
    %297 = vmatpush1.bf16.msra.mxu0 %v277
    %298 = vmatprep.subr.bf16.mxu0 0
    %299 = vmatpush1.bf16.msra.mxu0 %v278
    %300 = vmatprep.subr.bf16.mxu0 0
    %301 = vmatpush1.bf16.msra.mxu0 %v279
    %302 = vmatprep.subr.bf16.mxu0 0
    %303 = vmatpush1.bf16.msra.mxu0 %v280
    %304 = vmatprep.subr.bf16.mxu0 0
    %305 = vmatpush1.bf16.msra.mxu0 %v281
    %306 = vmatprep.subr.bf16.mxu0 0
    %307 = vmatpush1.bf16.msra.mxu0 0
    %308 = vmatprep.subr.bf16.mxu0 0
    %309 = vmatpush1.bf16.msra.mxu0 0
    %310 = vmatprep.subr.bf16.mxu0 0
    %311 = vmatpush1.bf16.msra.mxu0 0
    %312 = vmatprep.subr.bf16.mxu0 0
    %313 = vmatpush1.bf16.msra.mxu0 0
    %314 = vmatprep.subr.bf16.mxu0 0
    %315 = vmatpush1.bf16.msra.mxu0 0
    %316 = vmatprep.subr.bf16.mxu0 0
    %317 = vmatpush1.bf16.msra.mxu0 0
    %318 = vmatprep.subr.bf16.mxu0 0
    %319 = vmatpush1.bf16.msra.mxu0 0
    %320 = vmatprep.subr.bf16.mxu0 0
    %321 = vmatpush1.bf16.msra.mxu0 0
    %322 = vmatprep.mubr.bf16.mxu0 0
    %323 = vmatmul.mubr.bf16.gmra.mrb[0].mxu0 %v218
    %v324 = vpop.f32.mrb[0].mxu0
    %v325 = vadd.f32 %v240, %v324
    %v326 = vpop.f32.mrb[0].mxu0
    %v327 = vpop.f32.mrb[0].mxu0
    %v328 = vpop.f32.mrb[0].mxu0
    %329 = vdwg.mxu0
    %v330 = vmax.f32 %v325, 0.0
    %v331 = vpack.c.bf16 %v330, %v330
    %v332 = vld [vmem:[%s8] sm:$0xf]
    %v333 = vld [vmem:[%s9] sm:$0x1]
    %v335 = vlaneseq
    %v336 = vshrl.u32 %v335, 7
    %v337 = vsub.s32 0, %v336
    %v338 = vrot.slane %v333, %v337
    %v341 = vsel %vm164, %v331, 0
    %v344 = vsel %vm168, %v332, 0
    %346 = vmatprep.subr.bf16.mxu0 0
    %347 = vmatpush1.bf16.msra.mxu0 %v344
    %348 = vmatprep.subr.bf16.mxu0 0
    %349 = vmatpush1.bf16.msra.mxu0 0
    %350 = vmatprep.subr.bf16.mxu0 0
    %351 = vmatpush1.bf16.msra.mxu0 0
    %352 = vmatprep.subr.bf16.mxu0 0
    %353 = vmatpush1.bf16.msra.mxu0 0
    %354 = vmatprep.subr.bf16.mxu0 0
    %355 = vmatpush1.bf16.msra.mxu0 0
    %356 = vmatprep.subr.bf16.mxu0 0
    %357 = vmatpush1.bf16.msra.mxu0 0
    %358 = vmatprep.subr.bf16.mxu0 0
    %359 = vmatpush1.bf16.msra.mxu0 0
    %360 = vmatprep.subr.bf16.mxu0 0
    %361 = vmatpush1.bf16.msra.mxu0 0
    %362 = vmatprep.subr.bf16.mxu0 0
    %363 = vmatpush1.bf16.msra.mxu0 0
    %364 = vmatprep.subr.bf16.mxu0 0
    %365 = vmatpush1.bf16.msra.mxu0 0
    %366 = vmatprep.subr.bf16.mxu0 0
    %367 = vmatpush1.bf16.msra.mxu0 0
    %368 = vmatprep.subr.bf16.mxu0 0
    %369 = vmatpush1.bf16.msra.mxu0 0
    %370 = vmatprep.subr.bf16.mxu0 0
    %371 = vmatpush1.bf16.msra.mxu0 0
    %372 = vmatprep.subr.bf16.mxu0 0
    %373 = vmatpush1.bf16.msra.mxu0 0
    %374 = vmatprep.subr.bf16.mxu0 0
    %375 = vmatpush1.bf16.msra.mxu0 0
    %376 = vmatprep.subr.bf16.mxu0 0
    %377 = vmatpush1.bf16.msra.mxu0 0
    %378 = vmatprep.mubr.bf16.mxu0 0
    %379 = vmatmul.mubr.bf16.gmra.mrb[0].mxu0 %v341
    %v380 = vpop.f32.mrb[0].mxu0
    %v381 = vadd.f32 %v338, %v380
    %v382 = vpop.f32.mrb[0].mxu0
    %v383 = vpop.f32.mrb[0].mxu0
    %v384 = vpop.f32.mrb[0].mxu0
    %385 = vdwg.mxu0
    %v386 = vxor.u32 %v381, 2147483648
    %v387 = vmul.f32 %v386, 1.442695
    %v388 = vpow.pop %v387
    %v389 = vadd.f32 %v388, 1.0
    %v390 = vrcp.pop %v389
    %v391 = vmul.f32 1.0, %v390
    %v392 = vmul.f32 %v40, %v217
    %393 = vst [vmem:[#allocation2] sm:$0xff] %v392
    %v394 = vmul.f32 %v41, %v391
    %395 = vst [vmem:[#allocation4] sm:$0xff] %v394
    // Predicated region
    $region42: #{tpu_custom_call.1} parent=1 // pred_check
      _
    $region43: #{tpu_custom_call.1} parent=1 // pred_check_branch
      %397 = sbr.rel (0) target = $region45
    $region44: #{tpu_custom_call.1} parent=1 // pred_region
      %s399 = ssub.s32 128, 128
      %400 = vsyncadd [#allocation3], %s399
      %s402 = sshll.u32 [#allocation2], 4
      %s403 = int_to_ptr.vmem [resolvable:$true] %s402
      %405 = dma.vmem_to_hbm [thread:$0]  %s403, 128, %s10, [#allocation3]
    $region45: #{tpu_custom_call.1} parent=1 // pred_fallthru
      _
    // Predicated region
    $region46: #{tpu_custom_call.1} parent=1 // pred_check
      _
    $region47: #{tpu_custom_call.1} parent=1 // pred_check_branch
      %407 = sbr.rel (0) target = $region49
    $region48: #{tpu_custom_call.1} parent=1 // pred_region
      %s409 = ssub.s32 128, 128
      %410 = vsyncadd [#allocation5], %s409
      %s412 = sshll.u32 [#allocation4], 4
      %s413 = int_to_ptr.vmem [resolvable:$true] %s412
      %415 = dma.vmem_to_hbm [thread:$0]  %s413, 128, %s11, [#allocation5]
    $region49: #{tpu_custom_call.1} parent=1 // pred_fallthru
      _
    // Predicated region
    $region50: #{tpu_custom_call.1} parent=1 // pred_check
      _
    $region51: #{tpu_custom_call.1} parent=1 // pred_check_branch
      %417 = sbr.rel (0) target = $region53
    $region52: #{tpu_custom_call.1} parent=1 // pred_region
      %418 = dma.done [#allocation3], 128
    $region53: #{tpu_custom_call.1} parent=1 // pred_fallthru
      _
    // Predicated region
    $region54: #{tpu_custom_call.1} parent=1 // pred_check
      _
    $region55: #{tpu_custom_call.1} parent=1 // pred_check_branch
      %420 = sbr.rel (0) target = $region57
    $region56: #{tpu_custom_call.1} parent=1 // pred_region
      %421 = dma.done [#allocation5], 128
    $region57: #{tpu_custom_call.1} parent=1 // pred_fallthru
      _
    %422 = vsyncpa [#allocation3], 1
    %423 = vsyncpa [#allocation5], 1

</llo_original>
